<compile_context>
chip_gen: v7x
topology: tpu7x:2x2x1
jax: 0.10.0
libtpu: 0.0.40
codegen_flags: <defaults>
</compile_context>

<pallas_src>
import functools

import jax
import jax.numpy as jnp
from jax.experimental import pallas as pl
from jax.experimental.pallas import tpu as pltpu

EPS = 1e-12


def _wbce_kernel(x_ref, t_ref, w_ref, o_ref, acc_ref, *,
                 tiles_per_core, last_tile, rows_in_last, block_rows,
                 inv_nc, eps):
    """acc(1,C) += w(1,TM) @ bce(TM,C); scale + collapse once at the end."""
    ti = pl.program_id(1)                       # reduction axis (batch tiles)

    @pl.when(ti == 0)
    def _init():
        acc_ref[...] = jnp.zeros_like(acc_ref)

    x = x_ref[...].astype(jnp.float32)          # (TM, C) probabilities
    t = t_ref[...].astype(jnp.float32)          # (TM, C) targets
    w = w_ref[...].astype(jnp.float32)          # (1, TM) lane-dense weights

    # Elementwise BCE. The two logs ride the EUP slot (not the bottleneck).
    loss = -t * jnp.log(x + eps) - (1.0 - t) * jnp.log(1.0 - x + eps)

    needs_edge_mask = rows_in_last != block_rows      # static Python bool
    if needs_edge_mask:
        logical_tile = pl.program_id(0) * tiles_per_core + ti
        is_edge = logical_tile >= last_tile

        @pl.when(is_edge)
        def _edge_tile():
            # Only the single ragged edge tile per core pays for this select.
            # It zeroes the garbage rows the partial edge DMA may contain
            # (log(garbage) can be NaN/Inf and would poison even 0-weighted
            # rows through the matmul).
            rows = jax.lax.broadcasted_iota(jnp.int32, (block_rows, 1), 0)
            safe = jnp.where(rows < rows_in_last, loss, 0.0)
            acc_ref[...] += jnp.dot(w, safe,
                                    preferred_element_type=jnp.float32)

        @pl.when(jnp.logical_not(is_edge))
        def _inner_tile():
            acc_ref[...] += jnp.dot(w, loss,
                                    preferred_element_type=jnp.float32)
    else:
        acc_ref[...] += jnp.dot(w, loss, preferred_element_type=jnp.float32)

    @pl.when(ti == pl.num_programs(1) - 1)
    def _finalize():
        # One scalar multiply replaces the per-row mean + batch-mean divides.
        o_ref[0, 0] = jnp.sum(acc_ref[...]) * inv_nc


def _num_tensorcores():
    """Best-effort TensorCore count for the grid's core-split axis."""
    try:
        kind = jax.devices()[0].device_kind.lower()
    except Exception:
        return 1
    # v5e / v6e expose a single TensorCore per chip to Pallas; v7x has two.
    return 2 if "v7" in kind else 1


def weighted_bce(inputs, targets, weights, *, eps=EPS, block_rows=None,
                 num_cores=None):
    """inputs/targets: (N, C) float32 or bfloat16; weights: (N,). -> f32 scalar."""
    n, c = inputs.shape
    assert targets.shape == (n, c)
    assert weights.shape == (n,)

    # --- batch-tile sizing ---------------------------------------------------
    if block_rows is None:
        # ~2 MiB per input tile: amortizes the ~0.35us/step grid overhead while
        # 2 inputs x 2 pipeline buffers stay inside every generation's default
        # scoped-VMEM budget (16 MiB on v5e, 32 MiB on v6e/v7x).
        itemsize = jnp.dtype(inputs.dtype).itemsize
        block_rows = (2 * 1024 * 1024) // (c * itemsize)
    # Multiple of 128 so the lane-dense (1, TM) weights block is layout-legal.
    tm = max(128, (int(block_rows) // 128) * 128)
    if n <= tm:
        tm, n_tiles = n, 1                     # single tile: block == full dims
    else:
        n_tiles = pl.cdiv(n, tm)
    last_tile = n_tiles - 1
    rows_in_last = n - last_tile * tm

    # --- core split (useful on v7x only; a serial no-op elsewhere) -----------
    if num_cores is None:
        num_cores = _num_tensorcores()
    num_cores = num_cores if n_tiles >= 2 else 1
    tiles_per_core = pl.cdiv(n_tiles, num_cores)
    covered = num_cores * tiles_per_core * tm

    # --- weights: lane-dense, zero-padded to the covered grid ----------------
    # Zero padding makes every padded / re-read grid step contribute exactly 0
    # (no double counting) and is O(N) traffic vs O(N*C) for the main stream.
    w_row = weights.astype(jnp.float32).reshape(-1)
    if covered != n:
        w_row = jnp.pad(w_row, (0, covered - n))
    w_row = w_row.reshape(1, covered)

    def data_map(ci, ti):
        # Clamp so padded grid steps re-read the last real tile (their weights
        # are all zero, so they contribute nothing).
        return (jnp.minimum(ci * tiles_per_core + ti, last_tile), 0)

    def weights_map(ci, ti):
        return (0, ci * tiles_per_core + ti)

    kernel = functools.partial(
        _wbce_kernel,
        tiles_per_core=tiles_per_core,
        last_tile=last_tile,
        rows_in_last=rows_in_last,
        block_rows=tm,
        inv_nc=1.0 / (n * c),                  # true N and C, not padded sizes
        eps=eps,
    )

    bytes_in = (inputs.size * jnp.dtype(inputs.dtype).itemsize
                + targets.size * jnp.dtype(targets.dtype).itemsize
                + covered * 4)
    cost = pl.CostEstimate(flops=int(7 * n * c),
                           transcendentals=int(2 * n * c),
                           bytes_accessed=int(bytes_in + num_cores * 4))

    partials = pl.pallas_call(
        kernel,
        out_shape=jax.ShapeDtypeStruct((num_cores, 1), jnp.float32),
        grid_spec=pltpu.PrefetchScalarGridSpec(
            num_scalar_prefetch=0,
            grid=(num_cores, tiles_per_core),
            in_specs=[
                pl.BlockSpec((tm, c), data_map),      # inputs  (streamed)
                pl.BlockSpec((tm, c), data_map),      # targets (streamed)
                pl.BlockSpec((1, tm), weights_map),   # weights (lane-dense)
            ],
            # Scalar partial sum per core, written once at finalize.
            out_specs=pl.BlockSpec((1, 1), lambda ci, ti: (ci, 0),
                                   memory_space=pltpu.MemorySpace.SMEM),
            scratch_shapes=[pltpu.VMEM((1, c), jnp.float32)],   # vector acc
        ),
        compiler_params=pltpu.CompilerParams(
            # TODO(synk): on v7x verify the leading axis actually shards across
            # the 2 TensorCores; if not, switch it to pltpu.CORE_PARALLEL.
            dimension_semantics=("parallel", "arbitrary")),
        cost_estimate=cost,
    )(inputs, targets, w_row)

    return jnp.sum(partials)


def _reference(inputs, targets, weights, eps=EPS):
    x = inputs.astype(jnp.float32)
    t = targets.astype(jnp.float32)
    w = weights.astype(jnp.float32)
    loss3 = -t * jnp.log(x + eps) - (1.0 - t) * jnp.log(1.0 - x + eps)
    return jnp.mean(w * jnp.mean(loss3, axis=1))


if __name__ == "__main__":
    key = jax.random.PRNGKey(0)
    k1, k2, k3 = jax.random.split(key, 3)

    # Small shapes consistent with the module: (N, C) probabilities / targets,
    # (N,) per-sample weights.
    N, C = 300, 128
    inputs = jax.random.uniform(k1, (N, C), jnp.float32, 0.01, 0.99)
    targets = (jax.random.uniform(k2, (N, C)) > 0.5).astype(jnp.float32)
    weights = jax.random.uniform(k3, (N,), jnp.float32, 0.5, 1.5)

    ref = _reference(inputs, targets, weights)

    # 1) Multi-tile path with a ragged edge tile (300 rows, 128-row tiles).
    out1 = weighted_bce(inputs, targets, weights, block_rows=128)
    jax.block_until_ready(out1)
    assert jnp.allclose(out1, ref, rtol=1e-4, atol=1e-6), (out1, ref)

    # 2) Forced 2-way core split: exercises padded grid steps + zero-padded
    #    weights (a serial no-op on single-TC chips, but must stay correct).
    out2 = weighted_bce(inputs, targets, weights, block_rows=128, num_cores=2)
    jax.block_until_ready(out2)
    assert jnp.allclose(out2, ref, rtol=1e-4, atol=1e-6), (out2, ref)

    # 3) Default tile sizing (single tile at this size) + auto TC count.
    out3 = weighted_bce(inputs, targets, weights)
    jax.block_until_ready(out3)
    assert jnp.allclose(out3, ref, rtol=1e-4, atol=1e-6), (out3, ref)

    # 4) Tiny case: feature dim not a multiple of 128, batch fits one tile.
    Nt, Ct = 8, 32
    it = jax.random.uniform(k1, (Nt, Ct), jnp.float32, 0.01, 0.99)
    tt = (jax.random.uniform(k2, (Nt, Ct)) > 0.5).astype(jnp.float32)
    wt = jax.random.uniform(k3, (Nt,), jnp.float32, 0.5, 1.5)
    out4 = weighted_bce(it, tt, wt)
    jax.block_until_ready(out4)
    assert jnp.allclose(out4, _reference(it, tt, wt), rtol=1e-4, atol=1e-6)

    # 5) bf16 inputs/targets (halved-HBM-traffic path); reference computed on
    #    the same bf16-rounded values.
    ib = inputs.astype(jnp.bfloat16)
    tb = targets.astype(jnp.bfloat16)
    out5 = weighted_bce(ib, tb, weights, block_rows=128)
    jax.block_until_ready(out5)
    ref_b = _reference(ib.astype(jnp.float32), tb.astype(jnp.float32), weights)
    assert jnp.allclose(out5, ref_b, rtol=1e-4, atol=1e-6), (out5, ref_b)

    print("KERNEL_OK")
</pallas_src>

<mosaic_0001>
module attributes {stable_mosaic.version = 11 : i64} {
  func.func @_wbce_kernel(%arg0: i32, %arg1: i32, %arg2: memref<128x128xf32, #tpu.memory_space<vmem>>, %arg3: memref<128x128xf32, #tpu.memory_space<vmem>>, %arg4: memref<1x128xf32, #tpu.memory_space<vmem>>, %arg5: memref<1x1xf32, #tpu.memory_space<smem>>, %arg6: memref<1x128xf32, #tpu.memory_space<vmem>>) attributes {dimension_semantics = [#tpu.dimension_semantics<parallel>, #tpu.dimension_semantics<arbitrary>], iteration_bounds = array<i64: 1, 3>, scalar_prefetch = 0 : i64, scratch_operands = 1 : i64, tpu.core_type = #tpu.core_type<tc>, window_params = [{transform_indices = @transform_0, window_bounds = array<i64: 128, 128>}, {transform_indices = @transform_1, window_bounds = array<i64: 128, 128>}, {transform_indices = @transform_2, window_bounds = array<i64: 1, 128>}, {transform_indices = @transform_3, window_bounds = array<i64: 1, 1>}]} {
    %c0_i32 = arith.constant 0 : i32
    %0 = arith.cmpi eq, %arg1, %c0_i32 : i32
    %1 = arith.extui %0 : i1 to i32
    %c0_i32_0 = arith.constant 0 : i32
    %2 = arith.cmpi ne, %1, %c0_i32_0 : i32
    scf.if %2 {
      %cst_14 = arith.constant 0.000000e+00 : f32
      %32 = vector.broadcast %cst_14 : f32 to vector<1x128xf32>
      %c0_15 = arith.constant 0 : index
      %c0_16 = arith.constant 0 : index
      %33 = vector.load %arg6[%c0_15, %c0_16] : memref<1x128xf32, #tpu.memory_space<vmem>>, vector<1x128xf32>
      tpu.vector_store %arg6[%c0_15, %c0_16], %32 {strides = array<i32>} : memref<1x128xf32, #tpu.memory_space<vmem>>, vector<1x128xf32>,
    } else {
    }
    %c0 = arith.constant 0 : index
    %c0_1 = arith.constant 0 : index
    %3 = vector.load %arg2[%c0, %c0_1] : memref<128x128xf32, #tpu.memory_space<vmem>>, vector<128x128xf32>
    %c0_2 = arith.constant 0 : index
    %c0_3 = arith.constant 0 : index
    %4 = vector.load %arg3[%c0_2, %c0_3] : memref<128x128xf32, #tpu.memory_space<vmem>>, vector<128x128xf32>
    %c0_4 = arith.constant 0 : index
    %c0_5 = arith.constant 0 : index
    %5 = vector.load %arg4[%c0_4, %c0_5] : memref<1x128xf32, #tpu.memory_space<vmem>>, vector<1x128xf32>
    %cst = arith.constant 0.000000e+00 : f32
    %6 = vector.broadcast %cst : f32 to vector<128x128xf32>
    %7 = arith.subf %6, %4 : vector<128x128xf32>
    %cst_6 = arith.constant 9.99999996E-13 : f32
    %8 = vector.broadcast %cst_6 : f32 to vector<128x128xf32>
    %9 = arith.addf %3, %8 : vector<128x128xf32>
    %10 = math.log %9 : vector<128x128xf32>
    %11 = arith.mulf %7, %10 : vector<128x128xf32>
    %cst_7 = arith.constant 1.000000e+00 : f32
    %12 = vector.broadcast %cst_7 : f32 to vector<128x128xf32>
    %13 = arith.subf %12, %4 : vector<128x128xf32>
    %cst_8 = arith.constant 1.000000e+00 : f32
    %14 = vector.broadcast %cst_8 : f32 to vector<128x128xf32>
    %15 = arith.subf %14, %3 : vector<128x128xf32>
    %cst_9 = arith.constant 9.99999996E-13 : f32
    %16 = vector.broadcast %cst_9 : f32 to vector<128x128xf32>
    %17 = arith.addf %15, %16 : vector<128x128xf32>
    %18 = math.log %17 : vector<128x128xf32>
    %19 = arith.mulf %13, %18 : vector<128x128xf32>
    %20 = arith.subf %11, %19 : vector<128x128xf32>
    %c3_i32 = arith.constant 3 : i32
    %21 = arith.muli %arg0, %c3_i32 : i32
    %22 = arith.addi %21, %arg1 : i32
    %c2_i32 = arith.constant 2 : i32
    %23 = arith.cmpi sge, %22, %c2_i32 : i32
    %24 = arith.extui %23 : i1 to i32
    %c0_i32_10 = arith.constant 0 : i32
    %25 = arith.cmpi ne, %24, %c0_i32_10 : i32
    scf.if %25 {
      %32 = tpu.iota {dimensions = array<i32: 0>} : vector<128x1xi32>
      %c44_i32 = arith.constant 44 : i32
      %33 = vector.broadcast %c44_i32 : i32 to vector<128x1xi32>
      %34 = arith.cmpi slt, %32, %33 : vector<128x1xi32>
      %cst_14 = arith.constant 0.000000e+00 : f32
      %35 = vector.shape_cast %34 : vector<128x1xi1> to vector<128x1xi1>
      %36 = vector.broadcast %35 : vector<128x1xi1> to vector<128x128xi1>
      %37 = vector.broadcast %cst_14 : f32 to vector<128x128xf32>
      %38 = arith.select %36, %20, %37 : vector<128x128xi1>, vector<128x128xf32>
      %c0_15 = arith.constant 0 : index
      %c0_16 = arith.constant 0 : index
      %39 = vector.load %arg6[%c0_15, %c0_16] : memref<1x128xf32, #tpu.memory_space<vmem>>, vector<1x128xf32>
      %cst_17 = arith.constant dense<0.000000e+00> : vector<1x128xf32>
      %40 = tpu.matmul %5, %38, %cst_17 {dimension_numbers = #tpu.dot_dimension_numbers<[1], [0], [0], [1], [0, 0, 1, 1], [], []>} : vector<1x128xf32>, vector<128x128xf32>, vector<1x128xf32> -> vector<1x128xf32>
      %41 = arith.addf %39, %40 : vector<1x128xf32>
      %c0_18 = arith.constant 0 : index
      %c0_19 = arith.constant 0 : index
      %42 = vector.load %arg6[%c0_18, %c0_19] : memref<1x128xf32, #tpu.memory_space<vmem>>, vector<1x128xf32>
      tpu.vector_store %arg6[%c0_18, %c0_19], %41 {strides = array<i32>} : memref<1x128xf32, #tpu.memory_space<vmem>>, vector<1x128xf32>,
    } else {
    }
    %true = arith.constant true
    %26 = arith.xori %23, %true : i1
    %27 = arith.extui %26 : i1 to i32
    %c0_i32_11 = arith.constant 0 : i32
    %28 = arith.cmpi ne, %27, %c0_i32_11 : i32
    scf.if %28 {
      %c0_14 = arith.constant 0 : index
      %c0_15 = arith.constant 0 : index
      %32 = vector.load %arg6[%c0_14, %c0_15] : memref<1x128xf32, #tpu.memory_space<vmem>>, vector<1x128xf32>
      %cst_16 = arith.constant dense<0.000000e+00> : vector<1x128xf32>
      %33 = tpu.matmul %5, %20, %cst_16 {dimension_numbers = #tpu.dot_dimension_numbers<[1], [0], [0], [1], [0, 0, 1, 1], [], []>} : vector<1x128xf32>, vector<128x128xf32>, vector<1x128xf32> -> vector<1x128xf32>
      %34 = arith.addf %32, %33 : vector<1x128xf32>
      %c0_17 = arith.constant 0 : index
      %c0_18 = arith.constant 0 : index
      %35 = vector.load %arg6[%c0_17, %c0_18] : memref<1x128xf32, #tpu.memory_space<vmem>>, vector<1x128xf32>
      tpu.vector_store %arg6[%c0_17, %c0_18], %34 {strides = array<i32>} : memref<1x128xf32, #tpu.memory_space<vmem>>, vector<1x128xf32>,
    } else {
    }
    %c2_i32_12 = arith.constant 2 : i32
    %29 = arith.cmpi eq, %arg1, %c2_i32_12 : i32
    %30 = arith.extui %29 : i1 to i32
    %c0_i32_13 = arith.constant 0 : i32
    %31 = arith.cmpi ne, %30, %c0_i32_13 : i32
    scf.if %31 {
      %c0_14 = arith.constant 0 : index
      %c0_15 = arith.constant 0 : index
      %32 = vector.load %arg6[%c0_14, %c0_15] : memref<1x128xf32, #tpu.memory_space<vmem>>, vector<1x128xf32>
      %33 = vector.shape_cast %32 : vector<1x128xf32> to vector<1x1x128xf32>
      %cst_16 = arith.constant dense<0.000000e+00> : vector<1xf32>
      %34 = vector.multi_reduction <add>, %33, %cst_16 [1, 2] : vector<1x1x128xf32> to vector<1xf32>
      %35 = vector.shape_cast %34 : vector<1xf32> to vector<1x1x1xf32>
      %36 = vector.extract %35[0, 0, 0] : f32 from vector<1x1x1xf32>
      %cst_17 = arith.constant 2.60416673E-5 : f32
      %37 = arith.mulf %36, %cst_17 : f32
      %c0_18 = arith.constant 0 : index
      %c0_19 = arith.constant 0 : index
      %38 = memref.load %arg5[%c0_18, %c0_19] : memref<1x1xf32, #tpu.memory_space<smem>>
      memref.store %37, %arg5[%c0_18, %c0_19] : memref<1x1xf32, #tpu.memory_space<smem>>
    } else {
    }
    return
  }
  func.func @transform_0(%arg0: i32, %arg1: i32) -> (i32, i32) {
    %c3_i32 = arith.constant 3 : i32
    %0 = arith.muli %arg0, %c3_i32 : i32
    %1 = arith.addi %0, %arg1 : i32
    %c2_i32 = arith.constant 2 : i32
    %2 = arith.minsi %1, %c2_i32 : i32
    %c0_i32 = arith.constant 0 : i32
    %c0_i32_0 = arith.constant 0 : i32
    return %2, %c0_i32 : i32, i32
  }
  func.func @transform_1(%arg0: i32, %arg1: i32) -> (i32, i32) {
    %c3_i32 = arith.constant 3 : i32
    %0 = arith.muli %arg0, %c3_i32 : i32
    %1 = arith.addi %0, %arg1 : i32
    %c2_i32 = arith.constant 2 : i32
    %2 = arith.minsi %1, %c2_i32 : i32
    %c0_i32 = arith.constant 0 : i32
    %c0_i32_0 = arith.constant 0 : i32
    return %2, %c0_i32 : i32, i32
  }
  func.func @transform_2(%arg0: i32, %arg1: i32) -> (i32, i32) {
    %c3_i32 = arith.constant 3 : i32
    %0 = arith.muli %arg0, %c3_i32 : i32
    %1 = arith.addi %0, %arg1 : i32
    %c0_i32 = arith.constant 0 : i32
    %c0_i32_0 = arith.constant 0 : i32
    return %c0_i32, %1 : i32, i32
  }
  func.func @transform_3(%arg0: i32, %arg1: i32) -> (i32, i32) {
    %c0_i32 = arith.constant 0 : i32
    %c0_i32_0 = arith.constant 0 : i32
    return %arg0, %c0_i32 : i32, i32
  }
}

</mosaic_0001>

<llo_original>
// kernel: tpu_custom_call.1
$region0: #{tpu_custom_call.1}
  #allocation0 [shape = 'u32[]', space=smem, size = 0x4, offset = 0x4, fixed_abs, tag = 'smem constant byte address 0x4 - core index']
  #allocation1 [shape = 'u32[144,128]{1,0:T(1,128)}', space=vmem, size = 0x12000, scoped, tag = 'internal scratch']
  #allocation2 [shape = 'f32[1,128]{1,0:T(1,128)}', space=vmem, size = 0x200, scoped, tag = 'scratch operand']
  %s0 = inlined_call_operand.hbm [shape: f32[300,128], index: 0, kind: input, shape index: {}]
  %s1 = inlined_call_operand.hbm [shape: f32[300,128], index: 1, kind: input, shape index: {}]
  %s2 = inlined_call_operand.vmem [shape: f32[1,384], index: 2, kind: input, shape index: {}]
  %s3 = inlined_call_operand.hbm [shape: f32[1,1], index: 3, kind: output, shape index: {}]
  %s4 = sld [smem:[#allocation0]]
  $region69: #{tpu_custom_call.1} parent=0
    _
  %s6 = ssub.s32 1, %s4
  %s7 = scalar_select 0, %s6, %s4
  $region1: #{tpu_custom_call.1} parent=0
    #allocation3 [shape = 'u8[131072]{0}', space=vmem, size = 0x20000, scoped, tag = 'input window, operand 0']
    #allocation4 [shape = 's32[2]{0}', space=sflag, size = 0x8, scoped, tag = 'scoped memory for tpu_custom_call.1']
    #allocation5 [shape = 's32[2]{0}', space=sflag, size = 0x8, scoped, tag = 'scoped memory for tpu_custom_call.1']
    #allocation6 [shape = 'u8[131072]{0}', space=vmem, size = 0x20000, scoped, tag = 'input window, operand 1']
    #allocation7 [shape = 's32[2]{0}', space=sflag, size = 0x8, scoped, tag = 'scoped memory for tpu_custom_call.1']
    #allocation8 [shape = 'u8[512]{0}', space=smem, size = 0x200, scoped, tag = 'output window, operand 0, single buffered']
    %8 = vsyncpa [#allocation4], 0
    %s9 = scalar_lea.sflag [#allocation4], 1
    %10 = vsyncpa %s9, 0
    %11 = vsyncpa [#allocation7], 0
    %s12 = scalar_lea.sflag [#allocation7], 1
    %13 = vsyncpa %s12, 0
    %14 = vsyncpa [#allocation5], 0
    loop: start=0, step=1, limit=5
    $region2: #{tpu_custom_call.1} parent=1 // loop_pre_header
      _
    $region3: #{tpu_custom_call.1} parent=1 // loop_header
      %s16 = sphi 0, %s20
      %p17 = scmp.ge.s32.totalorder %s16, 5
      %s23 = sphi 0, %s35
      %s24 = sphi 0, %s31
      %s25 = sphi 0, %s23
      %s26 = sphi 0, %s24
      %s27 = sphi 0, %s25
      %s28 = sphi 0, %s26
      %s46 = sphi 0, %s48
      %s49 = sphi 0, %s46
      %s50 = sphi 0, %s49
      %s66 = sphi 0, %s50
      %s80 = sphi 0, %s82
      %s83 = sphi 0, %s80
      %s84 = sphi 0, %s83
      %s100 = sphi 0, %s84
      %s110 = sphi 0, %s112
      %s113 = sphi 0, %s110
      %s114 = sphi 0, %s113
      %s130 = sphi 0, %s114
      %s136 = sphi 0, %s138
      %s139 = sphi 0, %s136
      %s140 = sphi 0, %s139
      %s156 = sphi 0, %s140
    $region4: #{tpu_custom_call.1} parent=1 // loop_header_branch
      %19 = sbr.rel (%p17) target = $region8
    $region5: #{tpu_custom_call.1} parent=1 // loop_body
      %s21 = ssub.s32 %s16, 1
      %s22 = ssub.s32 %s16, 2
      %s29 = sadd.s32 1, %s24
      %p30 = scmp.ge.s32.totalorder %s29, 3
      %s31 = scalar_select %p30, 0, %s29
      %s32 = sadd.s32 1, %s23
      %s33 = scalar_select %p30, %s32, %s23
      %p34 = scmp.ge.s32.totalorder %s33, 1
      %s35 = scalar_select %p34, 0, %s33
      %s36 = smul.u32 %s23, 3
      %s37 = sadd.s32 %s36, %s24
      %p38 = scmp.lt.s32.totalorder %s37, 2
      %s39 = scalar_select %p38, %s37, 2
      %s40 = smul.u32 %s35, 3
      %s41 = sadd.s32 %s40, %s31
      %p42 = scmp.lt.s32.totalorder %s41, 2
      %s43 = scalar_select %p42, %s41, 2
      %s44 = ssub.s32 %s39, %s43
      %p45 = scmp.eq.s32.totalorder %s44, 0
      %s47 = sadd.s32 %s46, 1
      %s48 = scalar_select %p45, %s46, %s47
      %p51 = pneg %p45
      %p52 = scmp.eq.s32.totalorder %s16, 2
      %p53 = por %p51, %p52
      %p54 = scmp.ne.s32.totalorder %s46, %s49
      %p55 = scmp.eq.s32.totalorder %s16, 0
      %p56 = por %p54, %p55
      %p57 = scmp.ne.s32.totalorder %s46, %s49
      %p58 = scmp.eq.s32.totalorder %s21, 2
      %p59 = por %p57, %p58
      %p60 = scmp.ne.s32.totalorder %s49, %s50
      %p61 = scmp.eq.s32.totalorder %s21, 0
      %p62 = por %p60, %p61
      %p63 = scmp.ne.s32.totalorder %s49, %s50
      %p64 = scmp.eq.s32.totalorder %s22, 2
      %p65 = por %p63, %p64
      %p67 = scmp.ne.s32.totalorder %s50, %s66
      %p68 = scmp.eq.s32.totalorder %s22, 0
      %p69 = por %p67, %p68
      %s70 = smul.u32 %s23, 3
      %s71 = sadd.s32 %s70, %s24
      %p72 = scmp.lt.s32.totalorder %s71, 2
      %s73 = scalar_select %p72, %s71, 2
      %s74 = smul.u32 %s35, 3
      %s75 = sadd.s32 %s74, %s31
      %p76 = scmp.lt.s32.totalorder %s75, 2
      %s77 = scalar_select %p76, %s75, 2
      %s78 = ssub.s32 %s73, %s77
      %p79 = scmp.eq.s32.totalorder %s78, 0
      %s81 = sadd.s32 %s80, 1
      %s82 = scalar_select %p79, %s80, %s81
      %p85 = pneg %p79
      %p86 = scmp.eq.s32.totalorder %s16, 2
      %p87 = por %p85, %p86
      %p88 = scmp.ne.s32.totalorder %s80, %s83
      %p89 = scmp.eq.s32.totalorder %s16, 0
      %p90 = por %p88, %p89
      %p91 = scmp.ne.s32.totalorder %s80, %s83
      %p92 = scmp.eq.s32.totalorder %s21, 2
      %p93 = por %p91, %p92
      %p94 = scmp.ne.s32.totalorder %s83, %s84
      %p95 = scmp.eq.s32.totalorder %s21, 0
      %p96 = por %p94, %p95
      %p97 = scmp.ne.s32.totalorder %s83, %s84
      %p98 = scmp.eq.s32.totalorder %s22, 2
      %p99 = por %p97, %p98
      %p101 = scmp.ne.s32.totalorder %s84, %s100
      %p102 = scmp.eq.s32.totalorder %s22, 0
      %p103 = por %p101, %p102
      %s104 = smul.u32 %s23, 3
      %s105 = sadd.s32 %s104, %s24
      %s106 = smul.u32 %s35, 3
      %s107 = sadd.s32 %s106, %s31
      %s108 = ssub.s32 %s105, %s107
      %p109 = scmp.eq.s32.totalorder %s108, 0
      %s111 = sadd.s32 %s110, 1
      %s112 = scalar_select %p109, %s110, %s111
      %p115 = pneg %p109
      %p116 = scmp.eq.s32.totalorder %s16, 2
      %p117 = por %p115, %p116
      %p118 = scmp.ne.s32.totalorder %s110, %s113
      %p119 = scmp.eq.s32.totalorder %s16, 0
      %p120 = por %p118, %p119
      %p121 = scmp.ne.s32.totalorder %s110, %s113
      %p122 = scmp.eq.s32.totalorder %s21, 2
      %p123 = por %p121, %p122
      %p124 = scmp.ne.s32.totalorder %s113, %s114
      %p125 = scmp.eq.s32.totalorder %s21, 0
      %p126 = por %p124, %p125
      %p127 = scmp.ne.s32.totalorder %s113, %s114
      %p128 = scmp.eq.s32.totalorder %s22, 2
      %p129 = por %p127, %p128
      %p131 = scmp.ne.s32.totalorder %s114, %s130
      %p132 = scmp.eq.s32.totalorder %s22, 0
      %p133 = por %p131, %p132
      %s134 = ssub.s32 %s23, %s35
      %p135 = scmp.eq.s32.totalorder %s134, 0
      %s137 = sadd.s32 %s136, 1
      %s138 = scalar_select %p135, %s136, %s137
      %p141 = pneg %p135
      %p142 = scmp.eq.s32.totalorder %s16, 2
      %p143 = por %p141, %p142
      %p144 = scmp.ne.s32.totalorder %s136, %s139
      %p145 = scmp.eq.s32.totalorder %s16, 0
      %p146 = por %p144, %p145
      %p147 = scmp.ne.s32.totalorder %s136, %s139
      %p148 = scmp.eq.s32.totalorder %s21, 2
      %p149 = por %p147, %p148
      %p150 = scmp.ne.s32.totalorder %s139, %s140
      %p151 = scmp.eq.s32.totalorder %s21, 0
      %p152 = por %p150, %p151
      %p153 = scmp.ne.s32.totalorder %s139, %s140
      %p154 = scmp.eq.s32.totalorder %s22, 2
      %p155 = por %p153, %p154
      %p157 = scmp.ne.s32.totalorder %s140, %s156
      %p158 = scmp.eq.s32.totalorder %s22, 0
      %p159 = por %p157, %p158
      %p160 = scmp.le.s32.totalorder 1, %s16
      %p161 = scmp.lt.s32.totalorder %s16, 4
      %p162 = pnand %p160, %p161
      %p163 = pneg %p162
      // Predicated region
      $region9: #{tpu_custom_call.1} parent=5 // pred_check
        _
      $region10: #{tpu_custom_call.1} parent=5 // pred_check_branch
        %165 = sbr.rel (%p162) target = $region12
      $region11: #{tpu_custom_call.1} parent=5 // pred_region
        %s166 = ssub.s32 %s16, 1
      $region12: #{tpu_custom_call.1} parent=5 // pred_fallthru
        _
      %p167 = scmp.lt.s32.totalorder %s16, 3
      // Predicated region
      $region13: #{tpu_custom_call.1} parent=5 // pred_check
        %p168 = pneg %p167
      $region14: #{tpu_custom_call.1} parent=5 // pred_check_branch
        %170 = sbr.rel (%p168) target = $region16
      $region15: #{tpu_custom_call.1} parent=5 // pred_region
        // Predicated region
        $region17: #{tpu_custom_call.1} parent=15 // pred_check
          %p171 = pneg %p56
        $region18: #{tpu_custom_call.1} parent=15 // pred_check_branch
          %173 = sbr.rel (%p171) target = $region20
        $region19: #{tpu_custom_call.1} parent=15 // pred_region
          %s174 = sand.u32 %s46, 1
          %s175 = scalar_lea.sflag [#allocation4], %s174
          %s176 = sand.u32 %s46, 1
          %s177 = smul.addr %s176, 128
          %s178 = scalar_lea.vmem [#allocation3], %s177
          %s179 = smul.u32 %s23, 3
          %s180 = sadd.s32 %s179, %s24
          %p181 = scmp.lt.s32.totalorder %s180, 2
          %s182 = scalar_select %p181, %s180, 2
          %s183 = smul.u32 16, %s182
          %s184 = ssub.s32 38, %s183
          %p185 = scmp.lt.s32.totalorder %s184, 16
          %s186 = scalar_select %p185, %s184, 16
          %s187 = smul.u32 128, %s186
          %s189 = ssub.s32 2048, %s187
          %190 = vsyncadd %s175, %s189
          %p191 = scmp.ne.s32.totalorder 0, %s187
          %s192 = smul.addr %s183, 128
          %s193 = scalar_lea.hbm %s0, %s192
          %s194 = smul.u32 8, %s186
          %s195 = sshll.u32 %s178, 4
          %s196 = int_to_ptr.vmem [resolvable:$true] %s195
          %s197 = sshll.u32 %s194, 4
          %201 = dma.hbm_to_vmem [thread:$0]  (%p191), %s193, %s197, %s196, %s175, 128, 128, 8
        $region20: #{tpu_custom_call.1} parent=15 // pred_fallthru
          _
        // Predicated region
        $region21: #{tpu_custom_call.1} parent=15 // pred_check
          %p202 = pneg %p90
        $region22: #{tpu_custom_call.1} parent=15 // pred_check_branch
          %204 = sbr.rel (%p202) target = $region24
        $region23: #{tpu_custom_call.1} parent=15 // pred_region
          %s205 = sand.u32 %s80, 1
          %s206 = scalar_lea.sflag [#allocation7], %s205
          %s207 = sand.u32 %s80, 1
          %s208 = smul.addr %s207, 128
          %s209 = scalar_lea.vmem [#allocation6], %s208
          %s210 = smul.u32 %s23, 3
          %s211 = sadd.s32 %s210, %s24
          %p212 = scmp.lt.s32.totalorder %s211, 2
          %s213 = scalar_select %p212, %s211, 2
          %s214 = smul.u32 16, %s213
          %s215 = ssub.s32 38, %s214
          %p216 = scmp.lt.s32.totalorder %s215, 16
          %s217 = scalar_select %p216, %s215, 16
          %s218 = smul.u32 128, %s217
          %s220 = ssub.s32 2048, %s218
          %221 = vsyncadd %s206, %s220
          %p222 = scmp.ne.s32.totalorder 0, %s218
          %s223 = smul.addr %s214, 128
          %s224 = scalar_lea.hbm %s1, %s223
          %s225 = smul.u32 8, %s217
          %s226 = sshll.u32 %s209, 4
          %s227 = int_to_ptr.vmem [resolvable:$true] %s226
          %s228 = sshll.u32 %s225, 4
          %232 = dma.hbm_to_vmem [thread:$0]  (%p222), %s224, %s228, %s227, %s206, 128, 128, 8
        $region24: #{tpu_custom_call.1} parent=15 // pred_fallthru
          _
        // Predicated region
        $region25: #{tpu_custom_call.1} parent=15 // pred_check
          %p233 = pneg %p120
        $region26: #{tpu_custom_call.1} parent=15 // pred_check_branch
          %235 = sbr.rel (%p233) target = $region28
        $region27: #{tpu_custom_call.1} parent=15 // pred_region
          %s236 = smul.u32 %s23, 3
          %s237 = sadd.s32 %s236, %s24
          %p238 = scmp.lt.s32.totalorder %s237, 2
          %s239 = scalar_select %p238, %s237, 2
          %s240 = scalar_lea.vmem %s2, %s239
          %s241 = smul.u32 %s23, 3
          %s242 = sadd.s32 %s241, %s24
        $region28: #{tpu_custom_call.1} parent=15 // pred_fallthru
          _
      $region16: #{tpu_custom_call.1} parent=5 // pred_fallthru
        _
      %p243 = scmp.le.s32.totalorder 1, %s16
      %p244 = scmp.lt.s32.totalorder %s16, 4
      %p245 = pnand %p243, %p244
      %p246 = pneg %p245
      // Predicated region
      $region29: #{tpu_custom_call.1} parent=5 // pred_check
        _
      $region30: #{tpu_custom_call.1} parent=5 // pred_check_branch
        %248 = sbr.rel (%p245) target = $region32
      $region31: #{tpu_custom_call.1} parent=5 // pred_region
        %s249 = ssub.s32 %s16, 1
        %s250 = sand.u32 %s49, 1
        %s251 = scalar_lea.sflag [#allocation4], %s250
        %s252 = sand.u32 %s49, 1
        %s253 = smul.addr %s252, 128
        %s254 = scalar_lea.vmem [#allocation3], %s253
        // Predicated region
        $region33: #{tpu_custom_call.1} parent=31 // pred_check
          %p255 = pneg %p62
        $region34: #{tpu_custom_call.1} parent=31 // pred_check_branch
          %257 = sbr.rel (%p255) target = $region36
        $region35: #{tpu_custom_call.1} parent=31 // pred_region
          %258 = dma.done %s251, 2048
        $region36: #{tpu_custom_call.1} parent=31 // pred_fallthru
          _
        %s259 = sand.u32 %s83, 1
        %s260 = scalar_lea.sflag [#allocation7], %s259
        %s261 = sand.u32 %s83, 1
        %s262 = smul.addr %s261, 128
        %s263 = scalar_lea.vmem [#allocation6], %s262
        // Predicated region
        $region37: #{tpu_custom_call.1} parent=31 // pred_check
          %p264 = pneg %p96
        $region38: #{tpu_custom_call.1} parent=31 // pred_check_branch
          %266 = sbr.rel (%p264) target = $region40
        $region39: #{tpu_custom_call.1} parent=31 // pred_region
          %267 = dma.done %s260, 2048
        $region40: #{tpu_custom_call.1} parent=31 // pred_fallthru
          _
        %s268 = sand.u32 %s49, 1
        %s269 = scalar_lea.sflag [#allocation4], %s268
        %s270 = sand.u32 %s49, 1
        %s271 = smul.addr %s270, 128
        %s272 = scalar_lea.vmem [#allocation3], %s271
        %p273 = pneg %p62
        %p274 = pneg %p59
        %s275 = sand.u32 %s83, 1
        %s276 = scalar_lea.sflag [#allocation7], %s275
        %s277 = sand.u32 %s83, 1
        %s278 = smul.addr %s277, 128
        %s279 = scalar_lea.vmem [#allocation6], %s278
        %p280 = pneg %p96
        %p281 = pneg %p93
        %s282 = smul.u32 %s25, 3
        %s283 = sadd.s32 %s282, %s26
        %p284 = scmp.lt.s32.totalorder %s283, 2
        %s285 = scalar_select %p284, %s283, 2
        %s286 = scalar_lea.vmem %s2, %s285
        %p287 = pneg %p126
        %p288 = pneg %p123
        %p289 = pneg %p152
        %p290 = pneg %p149
        %s291 = smul.u32 %s25, 3
        %s292 = sadd.s32 %s291, %s26
        %p293 = scmp.lt.s32.totalorder %s292, 2
        %s294 = scalar_select %p293, %s292, 2
        %s295 = smul.u32 16, %s294
        %s296 = ssub.s32 38, %s295
        %p297 = scmp.lt.s32.totalorder %s296, 16
        %s298 = scalar_select %p297, %s296, 16
        %s299 = smul.u32 128, %s298
        %s300 = smul.u32 %s25, 3
        %s301 = sadd.s32 %s300, %s26
        %p302 = scmp.lt.s32.totalorder %s301, 2
        %s303 = scalar_select %p302, %s301, 2
        %s304 = smul.u32 16, %s303
        %s305 = ssub.s32 38, %s304
        %p306 = scmp.lt.s32.totalorder %s305, 16
        %s307 = scalar_select %p306, %s305, 16
        %s308 = smul.u32 128, %s307
        %s309 = smul.u32 %s25, 3
        %s310 = sadd.s32 %s309, %s26
        %p311 = scmp.lt.s32.totalorder %s310, 2
        %s312 = scalar_select %p311, %s310, 2
        %s313 = scalar_lea.vmem %s2, %s312
        %s314 = smul.u32 %s25, 3
        %s315 = sadd.s32 %s314, %s26
        %p316 = scmp.eq.s32.totalorder %s26, 0
        // Predicated region
        $region41: #{tpu_custom_call.1} parent=31 // pred_check
          %p317 = pneg %p316
        $region42: #{tpu_custom_call.1} parent=31 // pred_check_branch
          %319 = sbr.rel (%p317) target = $region44
        $region43: #{tpu_custom_call.1} parent=31 // pred_region
          %320 = vst [vmem:[#allocation2] sm:$0x1] 0.0
        $region44: #{tpu_custom_call.1} parent=31 // pred_fallthru
          _
        %v321 = vld [vmem:[%s254] sm:$0xff]
        %v322 = vld [vmem:[%s254 + $0x8] sm:$0xff]
        %v323 = vld [vmem:[%s254 + $0x10] sm:$0xff]
        %v324 = vld [vmem:[%s254 + $0x18] sm:$0xff]
        %v325 = vld [vmem:[%s254 + $0x20] sm:$0xff]
        %v326 = vld [vmem:[%s254 + $0x28] sm:$0xff]
        %v327 = vld [vmem:[%s254 + $0x30] sm:$0xff]
        %v328 = vld [vmem:[%s254 + $0x38] sm:$0xff]
        %v329 = vld [vmem:[%s254 + $0x40] sm:$0xff]
        %v330 = vld [vmem:[%s254 + $0x48] sm:$0xff]
        %v331 = vld [vmem:[%s254 + $0x50] sm:$0xff]
        %v332 = vld [vmem:[%s254 + $0x58] sm:$0xff]
        %v333 = vld [vmem:[%s254 + $0x60] sm:$0xff]
        %v334 = vld [vmem:[%s254 + $0x68] sm:$0xff]
        %v335 = vld [vmem:[%s254 + $0x70] sm:$0xff]
        %v336 = vld [vmem:[%s254 + $0x78] sm:$0xff]
        %v337 = vld [vmem:[%s263] sm:$0xff]
        %v338 = vld [vmem:[%s263 + $0x8] sm:$0xff]
        %v339 = vld [vmem:[%s263 + $0x10] sm:$0xff]
        %v340 = vld [vmem:[%s263 + $0x18] sm:$0xff]
        %v341 = vld [vmem:[%s263 + $0x20] sm:$0xff]
        %v342 = vld [vmem:[%s263 + $0x28] sm:$0xff]
        %v343 = vld [vmem:[%s263 + $0x30] sm:$0xff]
        %v344 = vld [vmem:[%s263 + $0x38] sm:$0xff]
        %v345 = vld [vmem:[%s263 + $0x40] sm:$0xff]
        %v346 = vld [vmem:[%s263 + $0x48] sm:$0xff]
        %v347 = vld [vmem:[%s263 + $0x50] sm:$0xff]
        %v348 = vld [vmem:[%s263 + $0x58] sm:$0xff]
        %v349 = vld [vmem:[%s263 + $0x60] sm:$0xff]
        %v350 = vld [vmem:[%s263 + $0x68] sm:$0xff]
        %v351 = vld [vmem:[%s263 + $0x70] sm:$0xff]
        %v352 = vld [vmem:[%s263 + $0x78] sm:$0xff]
        %v353 = vld [vmem:[%s313] sm:$0x1]
        %v354 = vsub.f32 0.0, %v337
        %v355 = vsub.f32 0.0, %v338
        %v356 = vsub.f32 0.0, %v339
        %v357 = vsub.f32 0.0, %v340
        %v358 = vsub.f32 0.0, %v341
        %v359 = vsub.f32 0.0, %v342
        %v360 = vsub.f32 0.0, %v343
        %v361 = vsub.f32 0.0, %v344
        %v362 = vsub.f32 0.0, %v345
        %v363 = vsub.f32 0.0, %v346
        %v364 = vsub.f32 0.0, %v347
        %v365 = vsub.f32 0.0, %v348
        %v366 = vsub.f32 0.0, %v349
        %v367 = vsub.f32 0.0, %v350
        %v368 = vsub.f32 0.0, %v351
        %v369 = vsub.f32 0.0, %v352
        %v370 = vadd.f32 %v321, 1e-12
        %v371 = vadd.f32 %v322, 1e-12
        %v372 = vadd.f32 %v323, 1e-12
        %v373 = vadd.f32 %v324, 1e-12
        %v374 = vadd.f32 %v325, 1e-12
        %v375 = vadd.f32 %v326, 1e-12
        %v376 = vadd.f32 %v327, 1e-12
        %v377 = vadd.f32 %v328, 1e-12
        %v378 = vadd.f32 %v329, 1e-12
        %v379 = vadd.f32 %v330, 1e-12
        %v380 = vadd.f32 %v331, 1e-12
        %v381 = vadd.f32 %v332, 1e-12
        %v382 = vadd.f32 %v333, 1e-12
        %v383 = vadd.f32 %v334, 1e-12
        %v384 = vadd.f32 %v335, 1e-12
        %v385 = vadd.f32 %v336, 1e-12
        %v386 = vlog2.pop %v370
        %v387 = vmul.f32 %v386, 0.6931472
        %v388 = vlog2.pop %v371
        %v389 = vmul.f32 %v388, 0.6931472
        %v390 = vlog2.pop %v372
        %v391 = vmul.f32 %v390, 0.6931472
        %v392 = vlog2.pop %v373
        %v393 = vmul.f32 %v392, 0.6931472
        %v394 = vlog2.pop %v374
        %v395 = vmul.f32 %v394, 0.6931472
        %v396 = vlog2.pop %v375
        %v397 = vmul.f32 %v396, 0.6931472
        %v398 = vlog2.pop %v376
        %v399 = vmul.f32 %v398, 0.6931472
        %v400 = vlog2.pop %v377
        %v401 = vmul.f32 %v400, 0.6931472
        %v402 = vlog2.pop %v378
        %v403 = vmul.f32 %v402, 0.6931472
        %v404 = vlog2.pop %v379
        %v405 = vmul.f32 %v404, 0.6931472
        %v406 = vlog2.pop %v380
        %v407 = vmul.f32 %v406, 0.6931472
        %v408 = vlog2.pop %v381
        %v409 = vmul.f32 %v408, 0.6931472
        %v410 = vlog2.pop %v382
        %v411 = vmul.f32 %v410, 0.6931472
        %v412 = vlog2.pop %v383
        %v413 = vmul.f32 %v412, 0.6931472
        %v414 = vlog2.pop %v384
        %v415 = vmul.f32 %v414, 0.6931472
        %v416 = vlog2.pop %v385
        %v417 = vmul.f32 %v416, 0.6931472
        %v418 = vmul.f32 %v354, %v387
        %v419 = vmul.f32 %v355, %v389
        %v420 = vmul.f32 %v356, %v391
        %v421 = vmul.f32 %v357, %v393
        %v422 = vmul.f32 %v358, %v395
        %v423 = vmul.f32 %v359, %v397
        %v424 = vmul.f32 %v360, %v399
        %v425 = vmul.f32 %v361, %v401
        %v426 = vmul.f32 %v362, %v403
        %v427 = vmul.f32 %v363, %v405
        %v428 = vmul.f32 %v364, %v407
        %v429 = vmul.f32 %v365, %v409
        %v430 = vmul.f32 %v366, %v411
        %v431 = vmul.f32 %v367, %v413
        %v432 = vmul.f32 %v368, %v415
        %v433 = vmul.f32 %v369, %v417
        %v434 = vsub.f32 1.0, %v337
        %v435 = vsub.f32 1.0, %v338
        %v436 = vsub.f32 1.0, %v339
        %v437 = vsub.f32 1.0, %v340
        %v438 = vsub.f32 1.0, %v341
        %v439 = vsub.f32 1.0, %v342
        %v440 = vsub.f32 1.0, %v343
        %v441 = vsub.f32 1.0, %v344
        %v442 = vsub.f32 1.0, %v345
        %v443 = vsub.f32 1.0, %v346
        %v444 = vsub.f32 1.0, %v347
        %v445 = vsub.f32 1.0, %v348
        %v446 = vsub.f32 1.0, %v349
        %v447 = vsub.f32 1.0, %v350
        %v448 = vsub.f32 1.0, %v351
        %v449 = vsub.f32 1.0, %v352
        %v450 = vsub.f32 1.0, %v321
        %v451 = vsub.f32 1.0, %v322
        %v452 = vsub.f32 1.0, %v323
        %v453 = vsub.f32 1.0, %v324
        %v454 = vsub.f32 1.0, %v325
        %v455 = vsub.f32 1.0, %v326
        %v456 = vsub.f32 1.0, %v327
        %v457 = vsub.f32 1.0, %v328
        %v458 = vsub.f32 1.0, %v329
        %v459 = vsub.f32 1.0, %v330
        %v460 = vsub.f32 1.0, %v331
        %v461 = vsub.f32 1.0, %v332
        %v462 = vsub.f32 1.0, %v333
        %v463 = vsub.f32 1.0, %v334
        %v464 = vsub.f32 1.0, %v335
        %v465 = vsub.f32 1.0, %v336
        %v466 = vadd.f32 %v450, 1e-12
        %v467 = vadd.f32 %v451, 1e-12
        %v468 = vadd.f32 %v452, 1e-12
        %v469 = vadd.f32 %v453, 1e-12
        %v470 = vadd.f32 %v454, 1e-12
        %v471 = vadd.f32 %v455, 1e-12
        %v472 = vadd.f32 %v456, 1e-12
        %v473 = vadd.f32 %v457, 1e-12
        %v474 = vadd.f32 %v458, 1e-12
        %v475 = vadd.f32 %v459, 1e-12
        %v476 = vadd.f32 %v460, 1e-12
        %v477 = vadd.f32 %v461, 1e-12
        %v478 = vadd.f32 %v462, 1e-12
        %v479 = vadd.f32 %v463, 1e-12
        %v480 = vadd.f32 %v464, 1e-12
        %v481 = vadd.f32 %v465, 1e-12
        %v482 = vlog2.pop %v466
        %v483 = vmul.f32 %v482, 0.6931472
        %v484 = vlog2.pop %v467
        %v485 = vmul.f32 %v484, 0.6931472
        %v486 = vlog2.pop %v468
        %v487 = vmul.f32 %v486, 0.6931472
        %v488 = vlog2.pop %v469
        %v489 = vmul.f32 %v488, 0.6931472
        %v490 = vlog2.pop %v470
        %v491 = vmul.f32 %v490, 0.6931472
        %v492 = vlog2.pop %v471
        %v493 = vmul.f32 %v492, 0.6931472
        %v494 = vlog2.pop %v472
        %v495 = vmul.f32 %v494, 0.6931472
        %v496 = vlog2.pop %v473
        %v497 = vmul.f32 %v496, 0.6931472
        %v498 = vlog2.pop %v474
        %v499 = vmul.f32 %v498, 0.6931472
        %v500 = vlog2.pop %v475
        %v501 = vmul.f32 %v500, 0.6931472
        %v502 = vlog2.pop %v476
        %v503 = vmul.f32 %v502, 0.6931472
        %v504 = vlog2.pop %v477
        %v505 = vmul.f32 %v504, 0.6931472
        %v506 = vlog2.pop %v478
        %v507 = vmul.f32 %v506, 0.6931472
        %v508 = vlog2.pop %v479
        %v509 = vmul.f32 %v508, 0.6931472
        %v510 = vlog2.pop %v480
        %v511 = vmul.f32 %v510, 0.6931472
        %v512 = vlog2.pop %v481
        %v513 = vmul.f32 %v512, 0.6931472
        %v514 = vmul.f32 %v434, %v483
        %v515 = vmul.f32 %v435, %v485
        %v516 = vmul.f32 %v436, %v487
        %v517 = vmul.f32 %v437, %v489
        %v518 = vmul.f32 %v438, %v491
        %v519 = vmul.f32 %v439, %v493
        %v520 = vmul.f32 %v440, %v495
        %v521 = vmul.f32 %v441, %v497
        %v522 = vmul.f32 %v442, %v499
        %v523 = vmul.f32 %v443, %v501
        %v524 = vmul.f32 %v444, %v503
        %v525 = vmul.f32 %v445, %v505
        %v526 = vmul.f32 %v446, %v507
        %v527 = vmul.f32 %v447, %v509
        %v528 = vmul.f32 %v448, %v511
        %v529 = vmul.f32 %v449, %v513
        %v530 = vsub.f32 %v418, %v514
        %v531 = vsub.f32 %v419, %v515
        %v532 = vsub.f32 %v420, %v516
        %v533 = vsub.f32 %v421, %v517
        %v534 = vsub.f32 %v422, %v518
        %v535 = vsub.f32 %v423, %v519
        %v536 = vsub.f32 %v424, %v520
        %v537 = vsub.f32 %v425, %v521
        %v538 = vsub.f32 %v426, %v522
        %v539 = vsub.f32 %v427, %v523
        %v540 = vsub.f32 %v428, %v524
        %v541 = vsub.f32 %v429, %v525
        %v542 = vsub.f32 %v430, %v526
        %v543 = vsub.f32 %v431, %v527
        %v544 = vsub.f32 %v432, %v528
        %v545 = vsub.f32 %v433, %v529
        %s546 = smul.u32 %s25, 3
        %s547 = sadd.s32 %s546, %s26
        %p548 = scmp.ge.s32.totalorder %s547, 2
        // Predicated region
        $region45: #{tpu_custom_call.1} parent=31 // pred_check
          %p549 = pneg %p548
        $region46: #{tpu_custom_call.1} parent=31 // pred_check_branch
          %551 = sbr.rel (%p549) target = $region48
        $region47: #{tpu_custom_call.1} parent=31 // pred_region
          %v552 = vlaneseq
          %v553 = vshrl.u32 %v552, 7
          %v554 = vadd.s32 %v553, 8
          %v555 = vadd.s32 %v553, 16
          %v556 = vadd.s32 %v553, 24
          %v557 = vadd.s32 %v553, 32
          %v558 = vadd.s32 %v553, 40
          %v559 = vadd.s32 %v553, 48
          %v560 = vadd.s32 %v553, 56
          %v561 = vadd.s32 %v553, 64
          %v562 = vadd.s32 %v553, 72
          %v563 = vadd.s32 %v553, 80
          %v564 = vadd.s32 %v553, 88
          %v565 = vadd.s32 %v553, 96
          %v566 = vadd.s32 %v553, 104
          %v567 = vadd.s32 %v553, 112
          %v568 = vadd.s32 %v553, 120
          %vm569 = vcmp.lt.s32.totalorder %v553, 44
          %vm570 = vcmp.lt.s32.totalorder %v554, 44
          %vm571 = vcmp.lt.s32.totalorder %v555, 44
          %vm572 = vcmp.lt.s32.totalorder %v556, 44
          %vm573 = vcmp.lt.s32.totalorder %v557, 44
          %vm574 = vcmp.lt.s32.totalorder %v558, 44
          %vm575 = vcmp.lt.s32.totalorder %v559, 44
          %vm576 = vcmp.lt.s32.totalorder %v560, 44
          %vm577 = vcmp.lt.s32.totalorder %v561, 44
          %vm578 = vcmp.lt.s32.totalorder %v562, 44
          %vm579 = vcmp.lt.s32.totalorder %v563, 44
          %vm580 = vcmp.lt.s32.totalorder %v564, 44
          %vm581 = vcmp.lt.s32.totalorder %v565, 44
          %vm582 = vcmp.lt.s32.totalorder %v566, 44
          %vm583 = vcmp.lt.s32.totalorder %v567, 44
          %vm584 = vcmp.lt.s32.totalorder %v568, 44
          %v585 = vsel %vm569, 1, 0
          %v586 = vsel %vm570, 1, 0
          %v587 = vsel %vm571, 1, 0
          %v588 = vsel %vm572, 1, 0
          %v589 = vsel %vm573, 1, 0
          %v590 = vsel %vm574, 1, 0
          %v591 = vsel %vm575, 1, 0
          %v592 = vsel %vm576, 1, 0
          %v593 = vsel %vm577, 1, 0
          %v594 = vsel %vm578, 1, 0
          %v595 = vsel %vm579, 1, 0
          %v596 = vsel %vm580, 1, 0
          %v597 = vsel %vm581, 1, 0
          %v598 = vsel %vm582, 1, 0
          %v599 = vsel %vm583, 1, 0
          %v600 = vsel %vm584, 1, 0
          %vm601 = vcmp.eq.s32.totalorder %v585, 1
          %vm602 = vcmp.eq.s32.totalorder %v586, 1
          %vm603 = vcmp.eq.s32.totalorder %v587, 1
          %vm604 = vcmp.eq.s32.totalorder %v588, 1
          %vm605 = vcmp.eq.s32.totalorder %v589, 1
          %vm606 = vcmp.eq.s32.totalorder %v590, 1
          %vm607 = vcmp.eq.s32.totalorder %v591, 1
          %vm608 = vcmp.eq.s32.totalorder %v592, 1
          %vm609 = vcmp.eq.s32.totalorder %v593, 1
          %vm610 = vcmp.eq.s32.totalorder %v594, 1
          %vm611 = vcmp.eq.s32.totalorder %v595, 1
          %vm612 = vcmp.eq.s32.totalorder %v596, 1
          %vm613 = vcmp.eq.s32.totalorder %v597, 1
          %vm614 = vcmp.eq.s32.totalorder %v598, 1
          %vm615 = vcmp.eq.s32.totalorder %v599, 1
          %vm616 = vcmp.eq.s32.totalorder %v600, 1
          %v617 = vsel %vm601, %v530, 0.0
          %v618 = vsel %vm602, %v531, 0.0
          %v619 = vsel %vm603, %v532, 0.0
          %v620 = vsel %vm604, %v533, 0.0
          %v621 = vsel %vm605, %v534, 0.0
          %v622 = vsel %vm606, %v535, 0.0
          %v623 = vsel %vm607, %v536, 0.0
          %v624 = vsel %vm608, %v537, 0.0
          %v625 = vsel %vm609, %v538, 0.0
          %v626 = vsel %vm610, %v539, 0.0
          %v627 = vsel %vm611, %v540, 0.0
          %v628 = vsel %vm612, %v541, 0.0
          %v629 = vsel %vm613, %v542, 0.0
          %v630 = vsel %vm614, %v543, 0.0
          %v631 = vsel %vm615, %v544, 0.0
          %v632 = vsel %vm616, %v545, 0.0
          %v633 = vld [vmem:[#allocation2] sm:$0x1]
          %634 = vmatprep.subr.mxu0 0.0
          %635 = vmatpush1.msra.mxu0 %v617
          %636 = vmatprep.subr.mxu0 0.0
          %637 = vmatpush1.msra.mxu0 %v618
          %638 = vmatprep.subr.mxu0 0.0
          %639 = vmatpush1.msra.mxu0 %v619
          %640 = vmatprep.subr.mxu0 0.0
          %641 = vmatpush1.msra.mxu0 %v620
          %642 = vmatprep.subr.mxu0 0.0
          %643 = vmatpush1.msra.mxu0 %v621
          %644 = vmatprep.subr.mxu0 0.0
          %645 = vmatpush1.msra.mxu0 %v622
          %646 = vmatprep.subr.mxu0 0.0
          %647 = vmatpush1.msra.mxu0 %v623
          %648 = vmatprep.subr.mxu0 0.0
          %649 = vmatpush1.msra.mxu0 %v624
          %650 = vmatprep.subr.mxu0 0.0
          %651 = vmatpush1.msra.mxu0 %v625
          %652 = vmatprep.subr.mxu0 0.0
          %653 = vmatpush1.msra.mxu0 %v626
          %654 = vmatprep.subr.mxu0 0.0
          %655 = vmatpush1.msra.mxu0 %v627
          %656 = vmatprep.subr.mxu0 0.0
          %657 = vmatpush1.msra.mxu0 %v628
          %658 = vmatprep.subr.mxu0 0.0
          %659 = vmatpush1.msra.mxu0 %v629
          %660 = vmatprep.subr.mxu0 0.0
          %661 = vmatpush1.msra.mxu0 %v630
          %662 = vmatprep.subr.mxu0 0.0
          %663 = vmatpush1.msra.mxu0 %v631
          %664 = vmatprep.subr.mxu0 0.0
          %665 = vmatpush1.msra.mxu0 %v632
          %666 = vmatprep.subr.mxu0 0.0
          %667 = vmatpush1.msra.mxu0 0.0
          %668 = vmatprep.subr.mxu0 0.0
          %669 = vmatpush1.msra.mxu0 0.0
          %670 = vmatprep.subr.mxu0 0.0
          %671 = vmatpush1.msra.mxu0 0.0
          %672 = vmatprep.subr.mxu0 0.0
          %673 = vmatpush1.msra.mxu0 0.0
          %674 = vmatprep.subr.mxu0 0.0
          %675 = vmatpush1.msra.mxu0 0.0
          %676 = vmatprep.subr.mxu0 0.0
          %677 = vmatpush1.msra.mxu0 0.0
          %678 = vmatprep.subr.mxu0 0.0
          %679 = vmatpush1.msra.mxu0 0.0
          %680 = vmatprep.subr.mxu0 0.0
          %681 = vmatpush1.msra.mxu0 0.0
          %682 = vmatprep.subr.mxu0 0.0
          %683 = vmatpush1.msra.mxu0 0.0
          %684 = vmatprep.subr.mxu0 0.0
          %685 = vmatpush1.msra.mxu0 0.0
          %686 = vmatprep.subr.mxu0 0.0
          %687 = vmatpush1.msra.mxu0 0.0
          %688 = vmatprep.subr.mxu0 0.0
          %689 = vmatpush1.msra.mxu0 0.0
          %690 = vmatprep.subr.mxu0 0.0
          %691 = vmatpush1.msra.mxu0 0.0
          %692 = vmatprep.subr.mxu0 0.0
          %693 = vmatpush1.msra.mxu0 0.0
          %694 = vmatprep.subr.mxu0 0.0
          %695 = vmatpush1.msra.mxu0 0.0
          %696 = vmatprep.subr.mxu0 0.0
          %697 = vmatpush1.msra.mxu0 0.0
          %698 = vmatprep.mubr.f32.mxu0 0.0
          %699 = vmatmul.mubr.f32.gmra.mrb[0].mxu0 %v353
          %v700 = vpop.f32.mrb[0].mxu0
          %v701 = vadd.f32 0.0, %v700
          %v702 = vpop.f32.mrb[0].mxu0
          %703 = vdwg.mxu0
          %v704 = vadd.f32 %v633, %v701
          %705 = vst [vmem:[#allocation2] sm:$0x1] %v704
        $region48: #{tpu_custom_call.1} parent=31 // pred_fallthru
          _
        %p706 = scmp.lt.s32.totalorder %s547, 2
        // Predicated region
        $region49: #{tpu_custom_call.1} parent=31 // pred_check
          %p707 = pneg %p706
        $region50: #{tpu_custom_call.1} parent=31 // pred_check_branch
          %709 = sbr.rel (%p707) target = $region52
        $region51: #{tpu_custom_call.1} parent=31 // pred_region
          %v710 = vld [vmem:[#allocation2] sm:$0x1]
          %711 = vmatprep.subr.mxu0 0.0
          %712 = vmatpush1.msra.mxu0 %v530
          %713 = vmatprep.subr.mxu0 0.0
          %714 = vmatpush1.msra.mxu0 %v531
          %715 = vmatprep.subr.mxu0 0.0
          %716 = vmatpush1.msra.mxu0 %v532
          %717 = vmatprep.subr.mxu0 0.0
          %718 = vmatpush1.msra.mxu0 %v533
          %719 = vmatprep.subr.mxu0 0.0
          %720 = vmatpush1.msra.mxu0 %v534
          %721 = vmatprep.subr.mxu0 0.0
          %722 = vmatpush1.msra.mxu0 %v535
          %723 = vmatprep.subr.mxu0 0.0
          %724 = vmatpush1.msra.mxu0 %v536
          %725 = vmatprep.subr.mxu0 0.0
          %726 = vmatpush1.msra.mxu0 %v537
          %727 = vmatprep.subr.mxu0 0.0
          %728 = vmatpush1.msra.mxu0 %v538
          %729 = vmatprep.subr.mxu0 0.0
          %730 = vmatpush1.msra.mxu0 %v539
          %731 = vmatprep.subr.mxu0 0.0
          %732 = vmatpush1.msra.mxu0 %v540
          %733 = vmatprep.subr.mxu0 0.0
          %734 = vmatpush1.msra.mxu0 %v541
          %735 = vmatprep.subr.mxu0 0.0
          %736 = vmatpush1.msra.mxu0 %v542
          %737 = vmatprep.subr.mxu0 0.0
          %738 = vmatpush1.msra.mxu0 %v543
          %739 = vmatprep.subr.mxu0 0.0
          %740 = vmatpush1.msra.mxu0 %v544
          %741 = vmatprep.subr.mxu0 0.0
          %742 = vmatpush1.msra.mxu0 %v545
          %743 = vmatprep.subr.mxu0 0.0
          %744 = vmatpush1.msra.mxu0 0.0
          %745 = vmatprep.subr.mxu0 0.0
          %746 = vmatpush1.msra.mxu0 0.0
          %747 = vmatprep.subr.mxu0 0.0
          %748 = vmatpush1.msra.mxu0 0.0
          %749 = vmatprep.subr.mxu0 0.0
          %750 = vmatpush1.msra.mxu0 0.0
          %751 = vmatprep.subr.mxu0 0.0
          %752 = vmatpush1.msra.mxu0 0.0
          %753 = vmatprep.subr.mxu0 0.0
          %754 = vmatpush1.msra.mxu0 0.0
          %755 = vmatprep.subr.mxu0 0.0
          %756 = vmatpush1.msra.mxu0 0.0
          %757 = vmatprep.subr.mxu0 0.0
          %758 = vmatpush1.msra.mxu0 0.0
          %759 = vmatprep.subr.mxu0 0.0
          %760 = vmatpush1.msra.mxu0 0.0
          %761 = vmatprep.subr.mxu0 0.0
          %762 = vmatpush1.msra.mxu0 0.0
          %763 = vmatprep.subr.mxu0 0.0
          %764 = vmatpush1.msra.mxu0 0.0
          %765 = vmatprep.subr.mxu0 0.0
          %766 = vmatpush1.msra.mxu0 0.0
          %767 = vmatprep.subr.mxu0 0.0
          %768 = vmatpush1.msra.mxu0 0.0
          %769 = vmatprep.subr.mxu0 0.0
          %770 = vmatpush1.msra.mxu0 0.0
          %771 = vmatprep.subr.mxu0 0.0
          %772 = vmatpush1.msra.mxu0 0.0
          %773 = vmatprep.subr.mxu0 0.0
          %774 = vmatpush1.msra.mxu0 0.0
          %775 = vmatprep.mubr.f32.mxu0 0.0
          %776 = vmatmul.mubr.f32.gmra.mrb[0].mxu0 %v353
          %v777 = vpop.f32.mrb[0].mxu0
          %v778 = vadd.f32 0.0, %v777
          %v779 = vpop.f32.mrb[0].mxu0
          %780 = vdwg.mxu0
          %v781 = vadd.f32 %v710, %v778
          %782 = vst [vmem:[#allocation2] sm:$0x1] %v781
        $region52: #{tpu_custom_call.1} parent=31 // pred_fallthru
          _
        %p783 = scmp.eq.s32.totalorder %s26, 2
        // Predicated region
        $region53: #{tpu_custom_call.1} parent=31 // pred_check
          %p784 = pneg %p783
        $region54: #{tpu_custom_call.1} parent=31 // pred_check_branch
          %786 = sbr.rel (%p784) target = $region56
        $region55: #{tpu_custom_call.1} parent=31 // pred_region
          %v787 = vld [vmem:[#allocation2] sm:$0x1]
          %vm788 = vcmask 1040384
          %v789 = vsel %vm788, %v787, 0.0
          %790 = vadd.xlane.f32.xlu0 %v789
          %v791 = vpop.xlane.xlu0 %790
          %v792 = vrot.slane %v791, 4
          %v793 = vadd.f32 %v791, %v792
          %v794 = vrot.slane %v793, 2
          %v795 = vadd.f32 %v793, %v794
          %v796 = vrot.slane %v795, 1
          %v797 = vadd.f32 %v795, %v796
          %s798 = vtos %v797
          %s799 = smul.f32 %s798, 2.6041667e-05
          %s800 = scalar_lea.smem [#allocation8], 0
          %801 = sst [smem:[%s800]] %s799
        $region56: #{tpu_custom_call.1} parent=31 // pred_fallthru
          _
        // Predicated region
        $region57: #{tpu_custom_call.1} parent=31 // pred_check
          %p802 = pneg %p149
        $region58: #{tpu_custom_call.1} parent=31 // pred_check_branch
          %804 = sbr.rel (%p802) target = $region60
        $region59: #{tpu_custom_call.1} parent=31 // pred_region
          %s806 = ssub.s32 16, 16
          %807 = vsyncadd [#allocation5], %s806
          %s808 = smul.addr %s25, 16
          %s809 = scalar_lea.hbm %s3, %s808
          %812 = dma.smem_to_hbm [#allocation8], 16, %s809, [#allocation5]
        $region60: #{tpu_custom_call.1} parent=31 // pred_fallthru
          _
        // Predicated region
        $region61: #{tpu_custom_call.1} parent=31 // pred_check
          %p813 = pneg %p149
        $region62: #{tpu_custom_call.1} parent=31 // pred_check_branch
          %815 = sbr.rel (%p813) target = $region64
        $region63: #{tpu_custom_call.1} parent=31 // pred_region
          %816 = dma.done [#allocation5], 16
        $region64: #{tpu_custom_call.1} parent=31 // pred_fallthru
          _
        %817 = sfence
      $region32: #{tpu_custom_call.1} parent=5 // pred_fallthru
        _
      %p818 = scmp.le.s32.totalorder 2, %s16
      // Predicated region
      $region65: #{tpu_custom_call.1} parent=5 // pred_check
        %p819 = pneg %p818
      $region66: #{tpu_custom_call.1} parent=5 // pred_check_branch
        %821 = sbr.rel (%p819) target = $region68
      $region67: #{tpu_custom_call.1} parent=5 // pred_region
        %s822 = ssub.s32 %s16, 2
      $region68: #{tpu_custom_call.1} parent=5 // pred_fallthru
        _
    $region6: #{tpu_custom_call.1} parent=1 // loop_footer
      %s20 = sadd.s32 1, %s16
    $region7: #{tpu_custom_call.1} parent=1 // loop_footer_branch
      %15 = sbr.rel target = $region3
    $region8: #{tpu_custom_call.1} parent=1 // loop_exit
      _
    %823 = vsyncpa [#allocation4], 1
    %s824 = scalar_lea.sflag [#allocation4], 1
    %825 = vsyncpa %s824, 1
    %826 = vsyncpa [#allocation7], 1
    %s827 = scalar_lea.sflag [#allocation7], 1
    %828 = vsyncpa %s827, 1
    %829 = vsyncpa [#allocation5], 1
    %s830 = scalar_lea.sflag [#allocation5], 1
    %831 = vsyncpa %s830, 1

</llo_original>
